<compile_context>
chip_gen: v7x
topology: tpu7x:2x2x1
jax: 0.10.0
libtpu: 0.0.40
codegen_flags: <defaults>
</compile_context>

<pallas_src>
import functools

import jax
import jax.numpy as jnp
from jax import lax
from jax.experimental import pallas as pl
from jax.experimental.pallas import tpu as pltpu

NEG_SLOPE = 0.01  # nn.LeakyReLU default negative_slope
# TODO(synk): training-mode dropout (random masking) is not implemented; eval
# semantics (identity) are used, matching inference of the PyTorch module.

SUB_S = 8      # sublane rows per in-kernel sub-tile (one vreg row group)
TL_MAX = 512   # lane width of the relayouted planes: an (8, 512) f32 plane is
               # 4 vregs, so layer 1 peaks at ~36 live vregs (fits the 64-vreg file)
TS_MAX = 512   # max sublane rows per grid step (512*512 f32 -> 4 MiB in / 1 MiB out)


def _make_layer_dims(n_hidden=2, n_nodes=(4, 3, 2, 1)):
    dims = []
    in_chan = n_nodes[0]
    for i in range(n_hidden + 2):
        out_chan = n_nodes[i]
        dims.append((in_chan, out_chan))
        in_chan = out_chan
    return tuple(dims)


LAYER_DIMS = _make_layer_dims()  # ((4,4), (4,3), (3,2), (2,1))


def _param_offsets(layer_dims):
    """(w_offset, b_offset) per layer into the packed flat parameter array."""
    offs = []
    o = 0
    for (n_in, n_out) in layer_dims:
        offs.append((o, o + n_in * n_out))
        o += n_in * n_out + n_out
    return tuple(offs), o


def pack_params(params):
    """Pack [(w(in,out), b(1,out)), ...] into one flat f32 array (SMEM operand)."""
    flat = []
    for (w, b) in params:
        flat.append(w.reshape(-1))  # row-major: index k*n_out + j
        flat.append(b.reshape(-1))
    return jnp.concatenate(flat).astype(jnp.float32)


def _cdiv(a, b):
    return -(-a // b)


def _round_up(a, b):
    return _cdiv(a, b) * b


def _pick_tiles(M):
    """Adaptive (TS, TL): large steps for large M, bounded padding for small M,
    and >= 2 grid steps whenever possible (v7x megacore)."""
    if M >= SUB_S * TL_MAX:
        tl = TL_MAX
    else:
        tl = max(128, _round_up(_cdiv(M, SUB_S), 128))
    ts = min(TS_MAX, max(SUB_S, _round_up(_cdiv(M, 2 * tl), SUB_S)))
    return ts, tl


def mlp_kernel(p_ref, x_ref, o_ref, *, layer_dims, offsets):
    """Whole MLP on one (n_feat, TS, TL) row-tile, all on the VPU.

    p_ref: SMEM f32[total_params]   packed weights + biases
    x_ref: VMEM (n_feat, TS, TL)    feature planes, rows dense on (sublane, lane)
    o_ref: VMEM (TS, TL)            lane-dense output plane
    """
    n_feat = layer_dims[0][0]
    ts, _ = o_ref.shape
    n_schunks = ts // SUB_S

    # Hoist all 46 SMEM scalar reads out of the sub-tile loop (read once per
    # kernel invocation).  Each in-loop scalar use becomes a single replicated
    # vreg splat (~12% of VALU ops); pre-broadcasting all 46 to plane shape
    # would exceed the 64-vreg register file, so we stop here.
    weights = []
    for (n_in, n_out), (w_off, b_off) in zip(layer_dims, offsets):
        w = [[p_ref[w_off + k * n_out + j] for j in range(n_out)]
             for k in range(n_in)]
        b = [p_ref[b_off + j] for j in range(n_out)]
        weights.append((w, b))

    def sub_tile(si, carry):
        r0 = pl.multiple_of(si * SUB_S, SUB_S)
        # One (8, TL) plane per input feature; intermediates stay in vregs.
        rows = [x_ref[k, pl.ds(r0, SUB_S), :].astype(jnp.float32)
                for k in range(n_feat)]
        for (n_in, n_out), (w, b) in zip(layer_dims, weights):
            new_rows = []
            for j in range(n_out):
                acc = rows[0] * w[0][j]
                for k in range(1, n_in):
                    acc = acc + rows[k] * w[k][j]
                acc = acc + b[j]
                # LeakyReLU(slope<1) == max(x, slope*x): one mul + one max.
                new_rows.append(jnp.maximum(acc, NEG_SLOPE * acc))
            rows = new_rows
        o_ref[pl.ds(r0, SUB_S), :] = rows[0].astype(o_ref.dtype)
        return carry

    lax.fori_loop(0, n_schunks, sub_tile, None)


@functools.partial(jax.jit, static_argnames=("layer_dims",))
def deep_vendor_simple_forward(x, packed_params, layer_dims=LAYER_DIMS):
    """x: (n_product, n_obs, n_features) -> y (mimics torch's y.squeeze())."""
    n_product, n_obs, n_feat = x.shape
    assert n_feat == layer_dims[0][0]

    offsets, total = _param_offsets(layer_dims)
    assert packed_params.shape == (total,)

    M = n_product * n_obs
    ts, tl = _pick_tiles(M)
    rows_per_step = ts * tl
    m_pad = _round_up(M, rows_per_step)
    S = m_pad // tl
    grid = (S // ts,)

    # Lane-dense relayout in the input's NATIVE dtype (no f32 upcast here):
    # pad + reshape + transpose fuse into a single HBM copy pass in XLA.
    x2 = x.reshape(M, n_feat)
    if m_pad != M:
        x2 = jnp.pad(x2, ((0, m_pad - M), (0, 0)))
    x3 = x2.reshape(S, tl, n_feat).transpose(2, 0, 1)   # (n_feat, S, tl)

    kernel = functools.partial(mlp_kernel, layer_dims=layer_dims,
                               offsets=offsets)

    out = pl.pallas_call(
        kernel,
        out_shape=jax.ShapeDtypeStruct((S, tl), x.dtype),
        grid_spec=pltpu.PrefetchScalarGridSpec(
            num_scalar_prefetch=0,
            grid=grid,
            in_specs=[
                # all 46 weights/biases in one tiny SMEM array (scalar reads)
                pl.BlockSpec(memory_space=pltpu.MemorySpace.SMEM),
                # x row-tile: (n_feat, TS, TL); last two dims (8k, 128k)-aligned.
                # TODO(synk): try pipeline_mode=pl.Buffered(3) here if an xprof
                # trace still shows exposed DMA at block boundaries.
                pl.BlockSpec((n_feat, ts, tl), lambda i: (0, i, 0)),
            ],
            # lane-dense output tile (TS, TL) -> unmasked full-width stores
            out_specs=pl.BlockSpec((ts, tl), lambda i: (i, 0)),
        ),
        compiler_params=pltpu.CompilerParams(
            dimension_semantics=("parallel",),   # megacore-shardable row tiles
            vmem_limit_bytes=32 * 1024 * 1024,   # headroom; <= physical on all gens
        ),
    )(packed_params, x3)

    y = out.reshape(m_pad)[:M].reshape(n_product, n_obs)
    # mimic torch's y.squeeze() on the (n_product, n_obs, 1) result
    return jnp.squeeze(y)


def init_params(key, n_nodes=(4, 3, 2, 1), n_hidden=2):
    """Layer i: Linear(in_chan, n_nodes[i]) as in generate_fc.
    Weights stored as (in, out) so math is h @ W (== x @ W_pt.T)."""
    layers = []
    in_chan = n_nodes[0]
    for i in range(n_hidden + 2):
        out_chan = n_nodes[i]
        key, kw, kb = jax.random.split(key, 3)
        bound = 1.0 / jnp.sqrt(in_chan)
        w = jax.random.uniform(kw, (in_chan, out_chan), jnp.float32,
                               minval=-bound, maxval=bound)
        b = jax.random.uniform(kb, (1, out_chan), jnp.float32,
                               minval=-bound, maxval=bound)
        layers.append((w, b))
        in_chan = out_chan
    return tuple(layers)


def reference_forward(x, params):
    """Pure-JAX f32 reference of the same MLP for correctness checks."""
    n_product, n_obs, n_feat = x.shape
    h = x.reshape(-1, n_feat).astype(jnp.float32)
    for (w, b) in params:
        h = jnp.dot(h, w, precision=jax.lax.Precision.HIGHEST) + b
        h = jnp.where(h >= 0, h, NEG_SLOPE * h)
    return jnp.squeeze(h.reshape(n_product, n_obs, 1))


if __name__ == "__main__":
    key = jax.random.PRNGKey(0)
    key, kx1, kx2 = jax.random.split(key, 3)

    params = init_params(key)
    packed = pack_params(params)

    # Small shape (M = 21): exercises the padding / tiny-tile path.
    x_small = jax.random.normal(kx1, (3, 7, 4), jnp.float32)
    y_small = jax.block_until_ready(deep_vendor_simple_forward(x_small, packed))
    y_small_ref = reference_forward(x_small, params)
    assert y_small.shape == (3, 7), y_small.shape
    assert jnp.allclose(y_small, y_small_ref, atol=1e-5, rtol=1e-5), \
        "small-case mismatch vs reference"

    # Medium shape (M = 65536): exercises multi-sub-tile + 2 parallel grid steps.
    x_med = jax.random.normal(kx2, (16, 4096, 4), jnp.float32)
    y_med = jax.block_until_ready(deep_vendor_simple_forward(x_med, packed))
    y_med_ref = reference_forward(x_med, params)
    assert y_med.shape == (16, 4096), y_med.shape
    assert jnp.allclose(y_med, y_med_ref, atol=1e-5, rtol=1e-5), \
        "medium-case mismatch vs reference"

    print("KERNEL_OK")
</pallas_src>

<mosaic_0001>
module attributes {stable_mosaic.version = 11 : i64} {
  func.func @mlp_kernel(%arg0: i32, %arg1: memref<46xf32, #tpu.memory_space<smem>>, %arg2: memref<4x8x128xf32, #tpu.memory_space<vmem>>, %arg3: memref<8x128xf32, #tpu.memory_space<vmem>>) attributes {dimension_semantics = [#tpu.dimension_semantics<parallel>], iteration_bounds = array<i64: 1>, scalar_prefetch = 0 : i64, scratch_operands = 0 : i64, tpu.core_type = #tpu.core_type<tc>, window_params = [{transform_indices = @transform_0, window_bounds = array<i64: 46>}, {transform_indices = @transform_1, window_bounds = array<i64: 4, 8, 128>}, {transform_indices = @transform_2, window_bounds = array<i64: 8, 128>}]} {
    %c0 = arith.constant 0 : index
    %0 = memref.load %arg1[%c0] : memref<46xf32, #tpu.memory_space<smem>>
    %c1 = arith.constant 1 : index
    %1 = memref.load %arg1[%c1] : memref<46xf32, #tpu.memory_space<smem>>
    %c2 = arith.constant 2 : index
    %2 = memref.load %arg1[%c2] : memref<46xf32, #tpu.memory_space<smem>>
    %c3 = arith.constant 3 : index
    %3 = memref.load %arg1[%c3] : memref<46xf32, #tpu.memory_space<smem>>
    %c4 = arith.constant 4 : index
    %4 = memref.load %arg1[%c4] : memref<46xf32, #tpu.memory_space<smem>>
    %c5 = arith.constant 5 : index
    %5 = memref.load %arg1[%c5] : memref<46xf32, #tpu.memory_space<smem>>
    %c6 = arith.constant 6 : index
    %6 = memref.load %arg1[%c6] : memref<46xf32, #tpu.memory_space<smem>>
    %c7 = arith.constant 7 : index
    %7 = memref.load %arg1[%c7] : memref<46xf32, #tpu.memory_space<smem>>
    %c8 = arith.constant 8 : index
    %8 = memref.load %arg1[%c8] : memref<46xf32, #tpu.memory_space<smem>>
    %c9 = arith.constant 9 : index
    %9 = memref.load %arg1[%c9] : memref<46xf32, #tpu.memory_space<smem>>
    %c10 = arith.constant 10 : index
    %10 = memref.load %arg1[%c10] : memref<46xf32, #tpu.memory_space<smem>>
    %c11 = arith.constant 11 : index
    %11 = memref.load %arg1[%c11] : memref<46xf32, #tpu.memory_space<smem>>
    %c12 = arith.constant 12 : index
    %12 = memref.load %arg1[%c12] : memref<46xf32, #tpu.memory_space<smem>>
    %c13 = arith.constant 13 : index
    %13 = memref.load %arg1[%c13] : memref<46xf32, #tpu.memory_space<smem>>
    %c14 = arith.constant 14 : index
    %14 = memref.load %arg1[%c14] : memref<46xf32, #tpu.memory_space<smem>>
    %c15 = arith.constant 15 : index
    %15 = memref.load %arg1[%c15] : memref<46xf32, #tpu.memory_space<smem>>
    %c16 = arith.constant 16 : index
    %16 = memref.load %arg1[%c16] : memref<46xf32, #tpu.memory_space<smem>>
    %c17 = arith.constant 17 : index
    %17 = memref.load %arg1[%c17] : memref<46xf32, #tpu.memory_space<smem>>
    %c18 = arith.constant 18 : index
    %18 = memref.load %arg1[%c18] : memref<46xf32, #tpu.memory_space<smem>>
    %c19 = arith.constant 19 : index
    %19 = memref.load %arg1[%c19] : memref<46xf32, #tpu.memory_space<smem>>
    %c20 = arith.constant 20 : index
    %20 = memref.load %arg1[%c20] : memref<46xf32, #tpu.memory_space<smem>>
    %c21 = arith.constant 21 : index
    %21 = memref.load %arg1[%c21] : memref<46xf32, #tpu.memory_space<smem>>
    %c22 = arith.constant 22 : index
    %22 = memref.load %arg1[%c22] : memref<46xf32, #tpu.memory_space<smem>>
    %c23 = arith.constant 23 : index
    %23 = memref.load %arg1[%c23] : memref<46xf32, #tpu.memory_space<smem>>
    %c24 = arith.constant 24 : index
    %24 = memref.load %arg1[%c24] : memref<46xf32, #tpu.memory_space<smem>>
    %c25 = arith.constant 25 : index
    %25 = memref.load %arg1[%c25] : memref<46xf32, #tpu.memory_space<smem>>
    %c26 = arith.constant 26 : index
    %26 = memref.load %arg1[%c26] : memref<46xf32, #tpu.memory_space<smem>>
    %c27 = arith.constant 27 : index
    %27 = memref.load %arg1[%c27] : memref<46xf32, #tpu.memory_space<smem>>
    %c28 = arith.constant 28 : index
    %28 = memref.load %arg1[%c28] : memref<46xf32, #tpu.memory_space<smem>>
    %c29 = arith.constant 29 : index
    %29 = memref.load %arg1[%c29] : memref<46xf32, #tpu.memory_space<smem>>
    %c30 = arith.constant 30 : index
    %30 = memref.load %arg1[%c30] : memref<46xf32, #tpu.memory_space<smem>>
    %c31 = arith.constant 31 : index
    %31 = memref.load %arg1[%c31] : memref<46xf32, #tpu.memory_space<smem>>
    %c32 = arith.constant 32 : index
    %32 = memref.load %arg1[%c32] : memref<46xf32, #tpu.memory_space<smem>>
    %c33 = arith.constant 33 : index
    %33 = memref.load %arg1[%c33] : memref<46xf32, #tpu.memory_space<smem>>
    %c34 = arith.constant 34 : index
    %34 = memref.load %arg1[%c34] : memref<46xf32, #tpu.memory_space<smem>>
    %c35 = arith.constant 35 : index
    %35 = memref.load %arg1[%c35] : memref<46xf32, #tpu.memory_space<smem>>
    %c36 = arith.constant 36 : index
    %36 = memref.load %arg1[%c36] : memref<46xf32, #tpu.memory_space<smem>>
    %c37 = arith.constant 37 : index
    %37 = memref.load %arg1[%c37] : memref<46xf32, #tpu.memory_space<smem>>
    %c38 = arith.constant 38 : index
    %38 = memref.load %arg1[%c38] : memref<46xf32, #tpu.memory_space<smem>>
    %c39 = arith.constant 39 : index
    %39 = memref.load %arg1[%c39] : memref<46xf32, #tpu.memory_space<smem>>
    %c40 = arith.constant 40 : index
    %40 = memref.load %arg1[%c40] : memref<46xf32, #tpu.memory_space<smem>>
    %c41 = arith.constant 41 : index
    %41 = memref.load %arg1[%c41] : memref<46xf32, #tpu.memory_space<smem>>
    %c42 = arith.constant 42 : index
    %42 = memref.load %arg1[%c42] : memref<46xf32, #tpu.memory_space<smem>>
    %c43 = arith.constant 43 : index
    %43 = memref.load %arg1[%c43] : memref<46xf32, #tpu.memory_space<smem>>
    %c44 = arith.constant 44 : index
    %44 = memref.load %arg1[%c44] : memref<46xf32, #tpu.memory_space<smem>>
    %c45 = arith.constant 45 : index
    %45 = memref.load %arg1[%c45] : memref<46xf32, #tpu.memory_space<smem>>
    %c0_i32 = arith.constant 0 : i32
    %c8_i32 = arith.constant 8 : i32
    %46 = arith.muli %c0_i32, %c8_i32 : i32
    %47 = tpu.assume_multiple %46, 8 : i32
    %c0_0 = arith.constant 0 : index
    %48 = arith.index_cast %47 : i32 to index
    %c0_1 = arith.constant 0 : index
    %49 = vector.load %arg2[%c0_0, %48, %c0_1] : memref<4x8x128xf32, #tpu.memory_space<vmem>>, vector<1x8x128xf32>
    %50 = vector.shape_cast %49 : vector<1x8x128xf32> to vector<8x128xf32>
    %c1_2 = arith.constant 1 : index
    %51 = arith.index_cast %47 : i32 to index
    %c0_3 = arith.constant 0 : index
    %52 = vector.load %arg2[%c1_2, %51, %c0_3] : memref<4x8x128xf32, #tpu.memory_space<vmem>>, vector<1x8x128xf32>
    %53 = vector.shape_cast %52 : vector<1x8x128xf32> to vector<8x128xf32>
    %c2_4 = arith.constant 2 : index
    %54 = arith.index_cast %47 : i32 to index
    %c0_5 = arith.constant 0 : index
    %55 = vector.load %arg2[%c2_4, %54, %c0_5] : memref<4x8x128xf32, #tpu.memory_space<vmem>>, vector<1x8x128xf32>
    %56 = vector.shape_cast %55 : vector<1x8x128xf32> to vector<8x128xf32>
    %c3_6 = arith.constant 3 : index
    %57 = arith.index_cast %47 : i32 to index
    %c0_7 = arith.constant 0 : index
    %58 = vector.load %arg2[%c3_6, %57, %c0_7] : memref<4x8x128xf32, #tpu.memory_space<vmem>>, vector<1x8x128xf32>
    %59 = vector.shape_cast %58 : vector<1x8x128xf32> to vector<8x128xf32>
    %60 = vector.broadcast %0 : f32 to vector<8x128xf32>
    %61 = arith.mulf %50, %60 : vector<8x128xf32>
    %62 = vector.broadcast %4 : f32 to vector<8x128xf32>
    %63 = arith.mulf %53, %62 : vector<8x128xf32>
    %64 = arith.addf %61, %63 : vector<8x128xf32>
    %65 = vector.broadcast %8 : f32 to vector<8x128xf32>
    %66 = arith.mulf %56, %65 : vector<8x128xf32>
    %67 = arith.addf %64, %66 : vector<8x128xf32>
    %68 = vector.broadcast %12 : f32 to vector<8x128xf32>
    %69 = arith.mulf %59, %68 : vector<8x128xf32>
    %70 = arith.addf %67, %69 : vector<8x128xf32>
    %71 = vector.broadcast %16 : f32 to vector<8x128xf32>
    %72 = arith.addf %70, %71 : vector<8x128xf32>
    %cst = arith.constant 0.00999999977 : f32
    %73 = vector.broadcast %cst : f32 to vector<8x128xf32>
    %74 = arith.mulf %73, %72 : vector<8x128xf32>
    %75 = arith.maximumf %72, %74 : vector<8x128xf32>
    %76 = vector.broadcast %1 : f32 to vector<8x128xf32>
    %77 = arith.mulf %50, %76 : vector<8x128xf32>
    %78 = vector.broadcast %5 : f32 to vector<8x128xf32>
    %79 = arith.mulf %53, %78 : vector<8x128xf32>
    %80 = arith.addf %77, %79 : vector<8x128xf32>
    %81 = vector.broadcast %9 : f32 to vector<8x128xf32>
    %82 = arith.mulf %56, %81 : vector<8x128xf32>
    %83 = arith.addf %80, %82 : vector<8x128xf32>
    %84 = vector.broadcast %13 : f32 to vector<8x128xf32>
    %85 = arith.mulf %59, %84 : vector<8x128xf32>
    %86 = arith.addf %83, %85 : vector<8x128xf32>
    %87 = vector.broadcast %17 : f32 to vector<8x128xf32>
    %88 = arith.addf %86, %87 : vector<8x128xf32>
    %cst_8 = arith.constant 0.00999999977 : f32
    %89 = vector.broadcast %cst_8 : f32 to vector<8x128xf32>
    %90 = arith.mulf %89, %88 : vector<8x128xf32>
    %91 = arith.maximumf %88, %90 : vector<8x128xf32>
    %92 = vector.broadcast %2 : f32 to vector<8x128xf32>
    %93 = arith.mulf %50, %92 : vector<8x128xf32>
    %94 = vector.broadcast %6 : f32 to vector<8x128xf32>
    %95 = arith.mulf %53, %94 : vector<8x128xf32>
    %96 = arith.addf %93, %95 : vector<8x128xf32>
    %97 = vector.broadcast %10 : f32 to vector<8x128xf32>
    %98 = arith.mulf %56, %97 : vector<8x128xf32>
    %99 = arith.addf %96, %98 : vector<8x128xf32>
    %100 = vector.broadcast %14 : f32 to vector<8x128xf32>
    %101 = arith.mulf %59, %100 : vector<8x128xf32>
    %102 = arith.addf %99, %101 : vector<8x128xf32>
    %103 = vector.broadcast %18 : f32 to vector<8x128xf32>
    %104 = arith.addf %102, %103 : vector<8x128xf32>
    %cst_9 = arith.constant 0.00999999977 : f32
    %105 = vector.broadcast %cst_9 : f32 to vector<8x128xf32>
    %106 = arith.mulf %105, %104 : vector<8x128xf32>
    %107 = arith.maximumf %104, %106 : vector<8x128xf32>
    %108 = vector.broadcast %3 : f32 to vector<8x128xf32>
    %109 = arith.mulf %50, %108 : vector<8x128xf32>
    %110 = vector.broadcast %7 : f32 to vector<8x128xf32>
    %111 = arith.mulf %53, %110 : vector<8x128xf32>
    %112 = arith.addf %109, %111 : vector<8x128xf32>
    %113 = vector.broadcast %11 : f32 to vector<8x128xf32>
    %114 = arith.mulf %56, %113 : vector<8x128xf32>
    %115 = arith.addf %112, %114 : vector<8x128xf32>
    %116 = vector.broadcast %15 : f32 to vector<8x128xf32>
    %117 = arith.mulf %59, %116 : vector<8x128xf32>
    %118 = arith.addf %115, %117 : vector<8x128xf32>
    %119 = vector.broadcast %19 : f32 to vector<8x128xf32>
    %120 = arith.addf %118, %119 : vector<8x128xf32>
    %cst_10 = arith.constant 0.00999999977 : f32
    %121 = vector.broadcast %cst_10 : f32 to vector<8x128xf32>
    %122 = arith.mulf %121, %120 : vector<8x128xf32>
    %123 = arith.maximumf %120, %122 : vector<8x128xf32>
    %124 = vector.broadcast %20 : f32 to vector<8x128xf32>
    %125 = arith.mulf %75, %124 : vector<8x128xf32>
    %126 = vector.broadcast %23 : f32 to vector<8x128xf32>
    %127 = arith.mulf %91, %126 : vector<8x128xf32>
    %128 = arith.addf %125, %127 : vector<8x128xf32>
    %129 = vector.broadcast %26 : f32 to vector<8x128xf32>
    %130 = arith.mulf %107, %129 : vector<8x128xf32>
    %131 = arith.addf %128, %130 : vector<8x128xf32>
    %132 = vector.broadcast %29 : f32 to vector<8x128xf32>
    %133 = arith.mulf %123, %132 : vector<8x128xf32>
    %134 = arith.addf %131, %133 : vector<8x128xf32>
    %135 = vector.broadcast %32 : f32 to vector<8x128xf32>
    %136 = arith.addf %134, %135 : vector<8x128xf32>
    %cst_11 = arith.constant 0.00999999977 : f32
    %137 = vector.broadcast %cst_11 : f32 to vector<8x128xf32>
    %138 = arith.mulf %137, %136 : vector<8x128xf32>
    %139 = arith.maximumf %136, %138 : vector<8x128xf32>
    %140 = vector.broadcast %21 : f32 to vector<8x128xf32>
    %141 = arith.mulf %75, %140 : vector<8x128xf32>
    %142 = vector.broadcast %24 : f32 to vector<8x128xf32>
    %143 = arith.mulf %91, %142 : vector<8x128xf32>
    %144 = arith.addf %141, %143 : vector<8x128xf32>
    %145 = vector.broadcast %27 : f32 to vector<8x128xf32>
    %146 = arith.mulf %107, %145 : vector<8x128xf32>
    %147 = arith.addf %144, %146 : vector<8x128xf32>
    %148 = vector.broadcast %30 : f32 to vector<8x128xf32>
    %149 = arith.mulf %123, %148 : vector<8x128xf32>
    %150 = arith.addf %147, %149 : vector<8x128xf32>
    %151 = vector.broadcast %33 : f32 to vector<8x128xf32>
    %152 = arith.addf %150, %151 : vector<8x128xf32>
    %cst_12 = arith.constant 0.00999999977 : f32
    %153 = vector.broadcast %cst_12 : f32 to vector<8x128xf32>
    %154 = arith.mulf %153, %152 : vector<8x128xf32>
    %155 = arith.maximumf %152, %154 : vector<8x128xf32>
    %156 = vector.broadcast %22 : f32 to vector<8x128xf32>
    %157 = arith.mulf %75, %156 : vector<8x128xf32>
    %158 = vector.broadcast %25 : f32 to vector<8x128xf32>
    %159 = arith.mulf %91, %158 : vector<8x128xf32>
    %160 = arith.addf %157, %159 : vector<8x128xf32>
    %161 = vector.broadcast %28 : f32 to vector<8x128xf32>
    %162 = arith.mulf %107, %161 : vector<8x128xf32>
    %163 = arith.addf %160, %162 : vector<8x128xf32>
    %164 = vector.broadcast %31 : f32 to vector<8x128xf32>
    %165 = arith.mulf %123, %164 : vector<8x128xf32>
    %166 = arith.addf %163, %165 : vector<8x128xf32>
    %167 = vector.broadcast %34 : f32 to vector<8x128xf32>
    %168 = arith.addf %166, %167 : vector<8x128xf32>
    %cst_13 = arith.constant 0.00999999977 : f32
    %169 = vector.broadcast %cst_13 : f32 to vector<8x128xf32>
    %170 = arith.mulf %169, %168 : vector<8x128xf32>
    %171 = arith.maximumf %168, %170 : vector<8x128xf32>
    %172 = vector.broadcast %35 : f32 to vector<8x128xf32>
    %173 = arith.mulf %139, %172 : vector<8x128xf32>
    %174 = vector.broadcast %37 : f32 to vector<8x128xf32>
    %175 = arith.mulf %155, %174 : vector<8x128xf32>
    %176 = arith.addf %173, %175 : vector<8x128xf32>
    %177 = vector.broadcast %39 : f32 to vector<8x128xf32>
    %178 = arith.mulf %171, %177 : vector<8x128xf32>
    %179 = arith.addf %176, %178 : vector<8x128xf32>
    %180 = vector.broadcast %41 : f32 to vector<8x128xf32>
    %181 = arith.addf %179, %180 : vector<8x128xf32>
    %cst_14 = arith.constant 0.00999999977 : f32
    %182 = vector.broadcast %cst_14 : f32 to vector<8x128xf32>
    %183 = arith.mulf %182, %181 : vector<8x128xf32>
    %184 = arith.maximumf %181, %183 : vector<8x128xf32>
    %185 = vector.broadcast %36 : f32 to vector<8x128xf32>
    %186 = arith.mulf %139, %185 : vector<8x128xf32>
    %187 = vector.broadcast %38 : f32 to vector<8x128xf32>
    %188 = arith.mulf %155, %187 : vector<8x128xf32>
    %189 = arith.addf %186, %188 : vector<8x128xf32>
    %190 = vector.broadcast %40 : f32 to vector<8x128xf32>
    %191 = arith.mulf %171, %190 : vector<8x128xf32>
    %192 = arith.addf %189, %191 : vector<8x128xf32>
    %193 = vector.broadcast %42 : f32 to vector<8x128xf32>
    %194 = arith.addf %192, %193 : vector<8x128xf32>
    %cst_15 = arith.constant 0.00999999977 : f32
    %195 = vector.broadcast %cst_15 : f32 to vector<8x128xf32>
    %196 = arith.mulf %195, %194 : vector<8x128xf32>
    %197 = arith.maximumf %194, %196 : vector<8x128xf32>
    %198 = vector.broadcast %43 : f32 to vector<8x128xf32>
    %199 = arith.mulf %184, %198 : vector<8x128xf32>
    %200 = vector.broadcast %44 : f32 to vector<8x128xf32>
    %201 = arith.mulf %197, %200 : vector<8x128xf32>
    %202 = arith.addf %199, %201 : vector<8x128xf32>
    %203 = vector.broadcast %45 : f32 to vector<8x128xf32>
    %204 = arith.addf %202, %203 : vector<8x128xf32>
    %cst_16 = arith.constant 0.00999999977 : f32
    %205 = vector.broadcast %cst_16 : f32 to vector<8x128xf32>
    %206 = arith.mulf %205, %204 : vector<8x128xf32>
    %207 = arith.maximumf %204, %206 : vector<8x128xf32>
    %208 = arith.index_cast %47 : i32 to index
    %c0_17 = arith.constant 0 : index
    %209 = vector.load %arg3[%208, %c0_17] : memref<8x128xf32, #tpu.memory_space<vmem>>, vector<8x128xf32>
    tpu.vector_store %arg3[%208, %c0_17], %207 {strides = array<i32>} : memref<8x128xf32, #tpu.memory_space<vmem>>, vector<8x128xf32>,
    %c1_i32 = arith.constant 1 : i32
    return
  }
  func.func @transform_0(%arg0: i32) -> i32 {
    %c0_i32 = arith.constant 0 : i32
    %c0_i32_0 = arith.constant 0 : i32
    return %c0_i32 : i32
  }
  func.func @transform_1(%arg0: i32) -> (i32, i32, i32) {
    %c0_i32 = arith.constant 0 : i32
    %c0_i32_0 = arith.constant 0 : i32
    %c0_i32_1 = arith.constant 0 : i32
    return %c0_i32, %arg0, %c0_i32_0 : i32, i32, i32
  }
  func.func @transform_2(%arg0: i32) -> (i32, i32) {
    %c0_i32 = arith.constant 0 : i32
    %c0_i32_0 = arith.constant 0 : i32
    return %arg0, %c0_i32 : i32, i32
  }
}

</mosaic_0001>

<llo_original>
// kernel: deep_vendor_simple_forward.1
$region0: #{deep_vendor_simple_forward.1}
  #allocation0 [shape = 'u32[]', space=smem, size = 0x4, offset = 0x4, fixed_abs, tag = 'smem constant byte address 0x4 - core index']
  #allocation1 [shape = 'u32[144,128]{1,0:T(1,128)}', space=vmem, size = 0x12000, scoped, tag = 'internal scratch']
  %s0 = inlined_call_operand.vmem [shape: f32[46], index: 0, kind: input, shape index: {}]
  %s1 = inlined_call_operand.vmem [shape: f32[4,8,128], index: 1, kind: input, shape index: {}]
  %s2 = inlined_call_operand.vmem [shape: f32[8,128], index: 2, kind: output, shape index: {}]
  %s3 = sld [smem:[#allocation0]]
  $region22: #{deep_vendor_simple_forward.1} parent=0
    _
  %s5 = ssub.s32 1, %s3
  %s6 = scalar_select 0, %s5, %s3
  $region1: #{deep_vendor_simple_forward.1} parent=0
    #allocation2 [shape = 'u8[512]{0}', space=smem, size = 0x200, scoped, tag = 'input window, operand 0, single buffered']
    #allocation3 [shape = 's32[1]{0}', space=sflag, size = 0x4, scoped, tag = 'scoped memory for deep_vendor_simple_forward.1']
    %7 = vsyncpa [#allocation3], 0
    // Predicated region
    $region2: #{deep_vendor_simple_forward.1} parent=1 // pred_check
      _
    $region3: #{deep_vendor_simple_forward.1} parent=1 // pred_check_branch
      %9 = sbr.rel (0) target = $region5
    $region4: #{deep_vendor_simple_forward.1} parent=1 // pred_region
      %s11 = ssub.s32 16, 16
      %12 = vsyncadd [#allocation3], %s11
      %s14 = sshll.u32 %s0, 4
      %s15 = int_to_ptr.vmem [resolvable:$true] %s14
      %17 = dma.vmem_to_smem %s15, 16, [#allocation2], [#allocation3]
    $region5: #{deep_vendor_simple_forward.1} parent=1 // pred_fallthru
      _
    // Predicated region
    $region6: #{deep_vendor_simple_forward.1} parent=1 // pred_check
      _
    $region7: #{deep_vendor_simple_forward.1} parent=1 // pred_check_branch
      %19 = sbr.rel (0) target = $region9
    $region8: #{deep_vendor_simple_forward.1} parent=1 // pred_region
      _
    $region9: #{deep_vendor_simple_forward.1} parent=1 // pred_fallthru
      _
    // Predicated region
    $region10: #{deep_vendor_simple_forward.1} parent=1 // pred_check
      _
    $region11: #{deep_vendor_simple_forward.1} parent=1 // pred_check_branch
      %21 = sbr.rel (0) target = $region13
    $region12: #{deep_vendor_simple_forward.1} parent=1 // pred_region
      %22 = dma.done [#allocation3], 16
    $region13: #{deep_vendor_simple_forward.1} parent=1 // pred_fallthru
      _
    %23 = sfence
    %s24 = sld [smem:[#allocation2]]
    %s25 = sld [smem:[#allocation2 + $0x1]]
    %s26 = sld [smem:[#allocation2 + $0x2]]
    %s27 = sld [smem:[#allocation2 + $0x3]]
    %s28 = sld [smem:[#allocation2 + $0x4]]
    %s29 = sld [smem:[#allocation2 + $0x5]]
    %s30 = sld [smem:[#allocation2 + $0x6]]
    %s31 = sld [smem:[#allocation2 + $0x7]]
    %s32 = sld [smem:[#allocation2 + $0x8]]
    %s33 = sld [smem:[#allocation2 + $0x9]]
    %s34 = sld [smem:[#allocation2 + $0xa]]
    %s35 = sld [smem:[#allocation2 + $0xb]]
    %s36 = sld [smem:[#allocation2 + $0xc]]
    %s37 = sld [smem:[#allocation2 + $0xd]]
    %s38 = sld [smem:[#allocation2 + $0xe]]
    %s39 = sld [smem:[#allocation2 + $0xf]]
    %s40 = sld [smem:[#allocation2 + $0x10]]
    %s41 = sld [smem:[#allocation2 + $0x11]]
    %s42 = sld [smem:[#allocation2 + $0x12]]
    %s43 = sld [smem:[#allocation2 + $0x13]]
    %s44 = sld [smem:[#allocation2 + $0x14]]
    %s45 = sld [smem:[#allocation2 + $0x15]]
    %s46 = sld [smem:[#allocation2 + $0x16]]
    %s47 = sld [smem:[#allocation2 + $0x17]]
    %s48 = sld [smem:[#allocation2 + $0x18]]
    %s49 = sld [smem:[#allocation2 + $0x19]]
    %s50 = sld [smem:[#allocation2 + $0x1a]]
    %s51 = sld [smem:[#allocation2 + $0x1b]]
    %s52 = sld [smem:[#allocation2 + $0x1c]]
    %s53 = sld [smem:[#allocation2 + $0x1d]]
    %s54 = sld [smem:[#allocation2 + $0x1e]]
    %s55 = sld [smem:[#allocation2 + $0x1f]]
    %s56 = sld [smem:[#allocation2 + $0x20]]
    %s57 = sld [smem:[#allocation2 + $0x21]]
    %s58 = sld [smem:[#allocation2 + $0x22]]
    %s59 = sld [smem:[#allocation2 + $0x23]]
    %s60 = sld [smem:[#allocation2 + $0x24]]
    %s61 = sld [smem:[#allocation2 + $0x25]]
    %s62 = sld [smem:[#allocation2 + $0x26]]
    %s63 = sld [smem:[#allocation2 + $0x27]]
    %s64 = sld [smem:[#allocation2 + $0x28]]
    %s65 = sld [smem:[#allocation2 + $0x29]]
    %s66 = sld [smem:[#allocation2 + $0x2a]]
    %s67 = sld [smem:[#allocation2 + $0x2b]]
    %s68 = sld [smem:[#allocation2 + $0x2c]]
    %s69 = sld [smem:[#allocation2 + $0x2d]]
    %v70 = vld [vmem:[%s1] sm:$0xff]
    %s71 = sadd.s32 0, 8
    %s72 = scalar_lea.vmem %s1, %s71
    %v73 = vld [vmem:[%s72] sm:$0xff]
    %s74 = sadd.s32 0, 16
    %s75 = scalar_lea.vmem %s1, %s74
    %v76 = vld [vmem:[%s75] sm:$0xff]
    %s77 = sadd.s32 0, 24
    %s78 = scalar_lea.vmem %s1, %s77
    %v79 = vld [vmem:[%s78] sm:$0xff]
    %v80 = vstv %s24
    %v81 = vmul.f32 %v70, %v80
    %v82 = vstv %s28
    %v83 = vmul.f32 %v73, %v82
    %v84 = vadd.f32 %v81, %v83
    %v85 = vstv %s32
    %v86 = vmul.f32 %v76, %v85
    %v87 = vadd.f32 %v84, %v86
    %v88 = vstv %s36
    %v89 = vmul.f32 %v79, %v88
    %v90 = vadd.f32 %v87, %v89
    %v91 = vstv %s40
    %v92 = vadd.f32 %v90, %v91
    %v93 = vmul.f32 %v92, 0.01
    %v94 = vmax.f32 %v92, %v93
    %v95 = vstv %s25
    %v96 = vmul.f32 %v70, %v95
    %v97 = vstv %s29
    %v98 = vmul.f32 %v73, %v97
    %v99 = vadd.f32 %v96, %v98
    %v100 = vstv %s33
    %v101 = vmul.f32 %v76, %v100
    %v102 = vadd.f32 %v99, %v101
    %v103 = vstv %s37
    %v104 = vmul.f32 %v79, %v103
    %v105 = vadd.f32 %v102, %v104
    %v106 = vstv %s41
    %v107 = vadd.f32 %v105, %v106
    %v108 = vmul.f32 %v107, 0.01
    %v109 = vmax.f32 %v107, %v108
    %v110 = vstv %s26
    %v111 = vmul.f32 %v70, %v110
    %v112 = vstv %s30
    %v113 = vmul.f32 %v73, %v112
    %v114 = vadd.f32 %v111, %v113
    %v115 = vstv %s34
    %v116 = vmul.f32 %v76, %v115
    %v117 = vadd.f32 %v114, %v116
    %v118 = vstv %s38
    %v119 = vmul.f32 %v79, %v118
    %v120 = vadd.f32 %v117, %v119
    %v121 = vstv %s42
    %v122 = vadd.f32 %v120, %v121
    %v123 = vmul.f32 %v122, 0.01
    %v124 = vmax.f32 %v122, %v123
    %v125 = vstv %s27
    %v126 = vmul.f32 %v70, %v125
    %v127 = vstv %s31
    %v128 = vmul.f32 %v73, %v127
    %v129 = vadd.f32 %v126, %v128
    %v130 = vstv %s35
    %v131 = vmul.f32 %v76, %v130
    %v132 = vadd.f32 %v129, %v131
    %v133 = vstv %s39
    %v134 = vmul.f32 %v79, %v133
    %v135 = vadd.f32 %v132, %v134
    %v136 = vstv %s43
    %v137 = vadd.f32 %v135, %v136
    %v138 = vmul.f32 %v137, 0.01
    %v139 = vmax.f32 %v137, %v138
    %v140 = vstv %s44
    %v141 = vmul.f32 %v94, %v140
    %v142 = vstv %s47
    %v143 = vmul.f32 %v109, %v142
    %v144 = vadd.f32 %v141, %v143
    %v145 = vstv %s50
    %v146 = vmul.f32 %v124, %v145
    %v147 = vadd.f32 %v144, %v146
    %v148 = vstv %s53
    %v149 = vmul.f32 %v139, %v148
    %v150 = vadd.f32 %v147, %v149
    %v151 = vstv %s56
    %v152 = vadd.f32 %v150, %v151
    %v153 = vmul.f32 %v152, 0.01
    %v154 = vmax.f32 %v152, %v153
    %v155 = vstv %s45
    %v156 = vmul.f32 %v94, %v155
    %v157 = vstv %s48
    %v158 = vmul.f32 %v109, %v157
    %v159 = vadd.f32 %v156, %v158
    %v160 = vstv %s51
    %v161 = vmul.f32 %v124, %v160
    %v162 = vadd.f32 %v159, %v161
    %v163 = vstv %s54
    %v164 = vmul.f32 %v139, %v163
    %v165 = vadd.f32 %v162, %v164
    %v166 = vstv %s57
    %v167 = vadd.f32 %v165, %v166
    %v168 = vmul.f32 %v167, 0.01
    %v169 = vmax.f32 %v167, %v168
    %v170 = vstv %s46
    %v171 = vmul.f32 %v94, %v170
    %v172 = vstv %s49
    %v173 = vmul.f32 %v109, %v172
    %v174 = vadd.f32 %v171, %v173
    %v175 = vstv %s52
    %v176 = vmul.f32 %v124, %v175
    %v177 = vadd.f32 %v174, %v176
    %v178 = vstv %s55
    %v179 = vmul.f32 %v139, %v178
    %v180 = vadd.f32 %v177, %v179
    %v181 = vstv %s58
    %v182 = vadd.f32 %v180, %v181
    %v183 = vmul.f32 %v182, 0.01
    %v184 = vmax.f32 %v182, %v183
    %v185 = vstv %s59
    %v186 = vmul.f32 %v154, %v185
    %v187 = vstv %s61
    %v188 = vmul.f32 %v169, %v187
    %v189 = vadd.f32 %v186, %v188
    %v190 = vstv %s63
    %v191 = vmul.f32 %v184, %v190
    %v192 = vadd.f32 %v189, %v191
    %v193 = vstv %s65
    %v194 = vadd.f32 %v192, %v193
    %v195 = vmul.f32 %v194, 0.01
    %v196 = vmax.f32 %v194, %v195
    %v197 = vstv %s60
    %v198 = vmul.f32 %v154, %v197
    %v199 = vstv %s62
    %v200 = vmul.f32 %v169, %v199
    %v201 = vadd.f32 %v198, %v200
    %v202 = vstv %s64
    %v203 = vmul.f32 %v184, %v202
    %v204 = vadd.f32 %v201, %v203
    %v205 = vstv %s66
    %v206 = vadd.f32 %v204, %v205
    %v207 = vmul.f32 %v206, 0.01
    %v208 = vmax.f32 %v206, %v207
    %v209 = vstv %s67
    %v210 = vmul.f32 %v196, %v209
    %v211 = vstv %s68
    %v212 = vmul.f32 %v208, %v211
    %v213 = vadd.f32 %v210, %v212
    %v214 = vstv %s69
    %v215 = vadd.f32 %v213, %v214
    %v216 = vmul.f32 %v215, 0.01
    %v217 = vmax.f32 %v215, %v216
    %218 = vst [vmem:[%s2] sm:$0xff] %v217
    // Predicated region
    $region14: #{deep_vendor_simple_forward.1} parent=1 // pred_check
      _
    $region15: #{deep_vendor_simple_forward.1} parent=1 // pred_check_branch
      %220 = sbr.rel (0) target = $region17
    $region16: #{deep_vendor_simple_forward.1} parent=1 // pred_region
      _
    $region17: #{deep_vendor_simple_forward.1} parent=1 // pred_fallthru
      _
    // Predicated region
    $region18: #{deep_vendor_simple_forward.1} parent=1 // pred_check
      _
    $region19: #{deep_vendor_simple_forward.1} parent=1 // pred_check_branch
      %222 = sbr.rel (0) target = $region21
    $region20: #{deep_vendor_simple_forward.1} parent=1 // pred_region
      _
    $region21: #{deep_vendor_simple_forward.1} parent=1 // pred_fallthru
      _
    %223 = vsyncpa [#allocation3], 1

</llo_original>
